<compile_context>
chip_gen: v7x
topology: tpu7x:2x2x1
jax: 0.10.0
libtpu: 0.0.40
codegen_flags: <defaults>
</compile_context>

<pallas_src>
import jax
import jax.numpy as jnp
from jax.experimental import pallas as pl
from jax.experimental.pallas import tpu as pltpu

D_IN = 784
D_HID = 256
D_OUT = 10
OUT_PAD = 128          # lane-dense padded width of the last layer


def _leaky_relu(x, slope=0.2):
    return jnp.where(x > 0, x, slope * x)


def discriminator_kernel(x_ref, w1_ref, b1_ref, w2_ref, b2_ref, w3_ref, b3_ref,
                         o_ref):
    # x tile: (TB, 784) f32 -> cast to bf16 on the VPU (hidden under the DMA)
    x = x_ref[...].astype(jnp.bfloat16)

    h1 = jnp.dot(x, w1_ref[...], preferred_element_type=jnp.float32)
    h1 = _leaky_relu(h1 + b1_ref[...]).astype(jnp.bfloat16)          # (TB, 256)

    h2 = jnp.dot(h1, w2_ref[...], preferred_element_type=jnp.float32)
    h2 = _leaky_relu(h2 + b2_ref[...]).astype(jnp.bfloat16)          # (TB, 256)

    h3 = jnp.dot(h2, w3_ref[...], preferred_element_type=jnp.float32)
    h3 = h3 + b3_ref[...]                                            # (TB, 128)

    # sigmoid via EUP exp + EUP approximate reciprocal
    sig = pl.reciprocal(1.0 + jnp.exp(-h3), approx=True)
    o_ref[...] = sig.astype(jnp.bfloat16)


def prepare_params(params):
    """One-time weight prep: bf16 cast + zero-pad last layer to 128 lanes."""
    w3p = jnp.zeros((D_HID, OUT_PAD), jnp.bfloat16).at[:, :D_OUT].set(
        params["w3"].astype(jnp.bfloat16))
    b3p = jnp.zeros((1, OUT_PAD), jnp.float32).at[:, :D_OUT].set(
        params["b3"].astype(jnp.float32))
    return {
        "w1": params["w1"].astype(jnp.bfloat16),
        "b1": params["b1"].astype(jnp.float32),
        "w2": params["w2"].astype(jnp.bfloat16),
        "b2": params["b2"].astype(jnp.float32),
        "w3": w3p,
        "b3": b3p,
    }


def _choose_tb(B):
    """Largest tile in {1024,512,256,128} that keeps >= 2 grid steps
    (so both v7x TensorCores get work); tiny batches -> one 8-aligned tile."""
    for cand in (1024, 512, 256, 128):
        if B >= 2 * cand:
            return cand
    return max(8, ((B + 7) // 8) * 8)


def discriminator_forward(x, prepped, tb=None):
    """x: (B, 784) float32.  prepped: output of prepare_params().
    Returns (B, 10) float32."""
    B = x.shape[0]
    if tb is None:
        tb = _choose_tb(B)
    nb = pl.cdiv(B, tb)
    B_pad = nb * tb
    if B_pad != B:
        # Only taken for ragged batch sizes; padded rows are sliced off below.
        x = jnp.pad(x, ((0, B_pad - B), (0, 0)))

    resident = lambda shape: pl.BlockSpec(shape, lambda i: (0, 0))

    out = pl.pallas_call(
        discriminator_kernel,
        out_shape=jax.ShapeDtypeStruct((B_pad, OUT_PAD), jnp.bfloat16),
        grid=(nb,),
        in_specs=[
            pl.BlockSpec((tb, D_IN), lambda i: (i, 0)),   # x: batch-tiled, f32
            resident((D_IN, D_HID)),                      # w1 (bf16)
            resident((1, D_HID)),                         # b1 (f32)
            resident((D_HID, D_HID)),                     # w2 (bf16)
            resident((1, D_HID)),                         # b2 (f32)
            resident((D_HID, OUT_PAD)),                   # w3 padded (bf16)
            resident((1, OUT_PAD)),                       # b3 padded (f32)
        ],
        out_specs=pl.BlockSpec((tb, OUT_PAD), lambda i: (i, 0)),
        compiler_params=pltpu.CompilerParams(
            dimension_semantics=("parallel",),
            vmem_limit_bytes=16 << 20,
        ),
    )(x, prepped["w1"], prepped["b1"], prepped["w2"], prepped["b2"],
      prepped["w3"], prepped["b3"])

    return out[:B, :D_OUT].astype(jnp.float32)


def init_params(key):
    """Deterministic init mimicking nn.Linear default: U(-1/sqrt(fan_in), 1/sqrt(fan_in))."""
    def linear(key, fan_in, fan_out):
        kw, kb = jax.random.split(key)
        bound = 1.0 / jnp.sqrt(fan_in)
        w = jax.random.uniform(kw, (fan_in, fan_out), jnp.float32, -bound, bound)
        b = jax.random.uniform(kb, (1, fan_out), jnp.float32, -bound, bound)
        return w, b

    k1, k2, k3 = jax.random.split(key, 3)
    w1, b1 = linear(k1, D_IN, D_HID)
    w2, b2 = linear(k2, D_HID, D_HID)
    w3, b3 = linear(k3, D_HID, D_OUT)
    return {"w1": w1, "b1": b1, "w2": w2, "b2": b2, "w3": w3, "b3": b3}


if __name__ == "__main__":
    key = jax.random.PRNGKey(0)
    k_params, k_x = jax.random.split(key)

    params = init_params(k_params)
    prepped = prepare_params(params)            # one-time weight prep

    B = 16                                      # small batch; (16, 784) input
    x = jax.random.normal(k_x, (B, D_IN), dtype=jnp.float32)

    fwd = jax.jit(lambda xx: discriminator_forward(xx, prepped))
    out = jax.block_until_ready(fwd(x))

    # sanity check against plain-JAX f32 reference (loose tol due to bf16 matmuls)
    def ref(x, p):
        h1 = x @ p["w1"] + p["b1"]
        h1 = jnp.where(h1 > 0, h1, 0.2 * h1)
        h2 = h1 @ p["w2"] + p["b2"]
        h2 = jnp.where(h2 > 0, h2, 0.2 * h2)
        return jax.nn.sigmoid(h2 @ p["w3"] + p["b3"])

    expected = ref(x, params)
    assert out.shape == (B, D_OUT)
    assert jnp.allclose(out, expected, atol=3e-2, rtol=0), (
        float(jnp.max(jnp.abs(out - expected))))

    print("KERNEL_OK")
</pallas_src>

<mosaic_0001>
module attributes {stable_mosaic.version = 11 : i64} {
  func.func @discriminator_kernel(%arg0: i32, %arg1: memref<16x784xf32, #tpu.memory_space<vmem>>, %arg2: memref<784x256xbf16, #tpu.memory_space<vmem>>, %arg3: memref<1x256xf32, #tpu.memory_space<vmem>>, %arg4: memref<256x256xbf16, #tpu.memory_space<vmem>>, %arg5: memref<1x256xf32, #tpu.memory_space<vmem>>, %arg6: memref<256x128xbf16, #tpu.memory_space<vmem>>, %arg7: memref<1x128xf32, #tpu.memory_space<vmem>>, %arg8: memref<16x128xbf16, #tpu.memory_space<vmem>>) attributes {dimension_semantics = [#tpu.dimension_semantics<parallel>], iteration_bounds = array<i64: 1>, scalar_prefetch = 0 : i64, scratch_operands = 0 : i64, tpu.core_type = #tpu.core_type<tc>, window_params = [{transform_indices = @transform_0, window_bounds = array<i64: 16, 784>}, {pipeline_mode = #tpu.pipeline_mode<synchronous>, transform_indices = @transform_1, window_bounds = array<i64: 784, 256>}, {pipeline_mode = #tpu.pipeline_mode<synchronous>, transform_indices = @transform_2, window_bounds = array<i64: 1, 256>}, {pipeline_mode = #tpu.pipeline_mode<synchronous>, transform_indices = @transform_3, window_bounds = array<i64: 256, 256>}, {pipeline_mode = #tpu.pipeline_mode<synchronous>, transform_indices = @transform_4, window_bounds = array<i64: 1, 256>}, {pipeline_mode = #tpu.pipeline_mode<synchronous>, transform_indices = @transform_5, window_bounds = array<i64: 256, 128>}, {pipeline_mode = #tpu.pipeline_mode<synchronous>, transform_indices = @transform_6, window_bounds = array<i64: 1, 128>}, {transform_indices = @transform_7, window_bounds = array<i64: 16, 128>}]} {
    %c0 = arith.constant 0 : index
    %c0_0 = arith.constant 0 : index
    %0 = vector.load %arg1[%c0, %c0_0] : memref<16x784xf32, #tpu.memory_space<vmem>>, vector<16x784xf32>
    %1 = arith.truncf %0 : vector<16x784xf32> to vector<16x784xbf16>
    %c0_1 = arith.constant 0 : index
    %c0_2 = arith.constant 0 : index
    %2 = vector.load %arg2[%c0_1, %c0_2] : memref<784x256xbf16, #tpu.memory_space<vmem>>, vector<784x256xbf16>
    %cst = arith.constant dense<0.000000e+00> : vector<16x256xf32>
    %3 = tpu.matmul %1, %2, %cst {dimension_numbers = #tpu.dot_dimension_numbers<[1], [0], [0], [1], [0, 0, 1, 1], [], []>} : vector<16x784xbf16>, vector<784x256xbf16>, vector<16x256xf32> -> vector<16x256xf32>
    %c0_3 = arith.constant 0 : index
    %c0_4 = arith.constant 0 : index
    %4 = vector.load %arg3[%c0_3, %c0_4] : memref<1x256xf32, #tpu.memory_space<vmem>>, vector<1x256xf32>
    %5 = vector.broadcast %4 : vector<1x256xf32> to vector<16x256xf32>
    %6 = arith.addf %3, %5 : vector<16x256xf32>
    %cst_5 = arith.constant 0.000000e+00 : f32
    %7 = vector.broadcast %cst_5 : f32 to vector<16x256xf32>
    %8 = arith.cmpf ogt, %6, %7 : vector<16x256xf32>
    %cst_6 = arith.constant 2.000000e-01 : f32
    %9 = vector.broadcast %cst_6 : f32 to vector<16x256xf32>
    %10 = arith.mulf %9, %6 : vector<16x256xf32>
    %11 = arith.select %8, %6, %10 : vector<16x256xi1>, vector<16x256xf32>
    %12 = arith.truncf %11 : vector<16x256xf32> to vector<16x256xbf16>
    %c0_7 = arith.constant 0 : index
    %c0_8 = arith.constant 0 : index
    %13 = vector.load %arg4[%c0_7, %c0_8] : memref<256x256xbf16, #tpu.memory_space<vmem>>, vector<256x256xbf16>
    %cst_9 = arith.constant dense<0.000000e+00> : vector<16x256xf32>
    %14 = tpu.matmul %12, %13, %cst_9 {dimension_numbers = #tpu.dot_dimension_numbers<[1], [0], [0], [1], [0, 0, 1, 1], [], []>} : vector<16x256xbf16>, vector<256x256xbf16>, vector<16x256xf32> -> vector<16x256xf32>
    %c0_10 = arith.constant 0 : index
    %c0_11 = arith.constant 0 : index
    %15 = vector.load %arg5[%c0_10, %c0_11] : memref<1x256xf32, #tpu.memory_space<vmem>>, vector<1x256xf32>
    %16 = vector.broadcast %15 : vector<1x256xf32> to vector<16x256xf32>
    %17 = arith.addf %14, %16 : vector<16x256xf32>
    %cst_12 = arith.constant 0.000000e+00 : f32
    %18 = vector.broadcast %cst_12 : f32 to vector<16x256xf32>
    %19 = arith.cmpf ogt, %17, %18 : vector<16x256xf32>
    %cst_13 = arith.constant 2.000000e-01 : f32
    %20 = vector.broadcast %cst_13 : f32 to vector<16x256xf32>
    %21 = arith.mulf %20, %17 : vector<16x256xf32>
    %22 = arith.select %19, %17, %21 : vector<16x256xi1>, vector<16x256xf32>
    %23 = arith.truncf %22 : vector<16x256xf32> to vector<16x256xbf16>
    %c0_14 = arith.constant 0 : index
    %c0_15 = arith.constant 0 : index
    %24 = vector.load %arg6[%c0_14, %c0_15] : memref<256x128xbf16, #tpu.memory_space<vmem>>, vector<256x128xbf16>
    %cst_16 = arith.constant dense<0.000000e+00> : vector<16x128xf32>
    %25 = tpu.matmul %23, %24, %cst_16 {dimension_numbers = #tpu.dot_dimension_numbers<[1], [0], [0], [1], [0, 0, 1, 1], [], []>} : vector<16x256xbf16>, vector<256x128xbf16>, vector<16x128xf32> -> vector<16x128xf32>
    %c0_17 = arith.constant 0 : index
    %c0_18 = arith.constant 0 : index
    %26 = vector.load %arg7[%c0_17, %c0_18] : memref<1x128xf32, #tpu.memory_space<vmem>>, vector<1x128xf32>
    %27 = vector.broadcast %26 : vector<1x128xf32> to vector<16x128xf32>
    %28 = arith.addf %25, %27 : vector<16x128xf32>
    %cst_19 = arith.constant 0.000000e+00 : f32
    %29 = vector.broadcast %cst_19 : f32 to vector<16x128xf32>
    %30 = arith.subf %29, %28 : vector<16x128xf32>
    %31 = math.exp %30 : vector<16x128xf32>
    %cst_20 = arith.constant 1.000000e+00 : f32
    %32 = vector.broadcast %cst_20 : f32 to vector<16x128xf32>
    %33 = arith.addf %32, %31 : vector<16x128xf32>
    %34 = tpu.reciprocal %33 {approx = true} : vector<16x128xf32> -> vector<16x128xf32>
    %35 = arith.truncf %34 : vector<16x128xf32> to vector<16x128xbf16>
    %c0_21 = arith.constant 0 : index
    %c0_22 = arith.constant 0 : index
    %36 = vector.load %arg8[%c0_21, %c0_22] : memref<16x128xbf16, #tpu.memory_space<vmem>>, vector<16x128xbf16>
    tpu.vector_store %arg8[%c0_21, %c0_22], %35 {strides = array<i32>} : memref<16x128xbf16, #tpu.memory_space<vmem>>, vector<16x128xbf16>,
    return
  }
  func.func @transform_0(%arg0: i32) -> (i32, i32) {
    %c0_i32 = arith.constant 0 : i32
    %c0_i32_0 = arith.constant 0 : i32
    return %arg0, %c0_i32 : i32, i32
  }
  func.func @transform_1(%arg0: i32) -> (i32, i32) {
    %c0_i32 = arith.constant 0 : i32
    %c0_i32_0 = arith.constant 0 : i32
    %c0_i32_1 = arith.constant 0 : i32
    return %c0_i32, %c0_i32_0 : i32, i32
  }
  func.func @transform_2(%arg0: i32) -> (i32, i32) {
    %c0_i32 = arith.constant 0 : i32
    %c0_i32_0 = arith.constant 0 : i32
    %c0_i32_1 = arith.constant 0 : i32
    return %c0_i32, %c0_i32_0 : i32, i32
  }
  func.func @transform_3(%arg0: i32) -> (i32, i32) {
    %c0_i32 = arith.constant 0 : i32
    %c0_i32_0 = arith.constant 0 : i32
    %c0_i32_1 = arith.constant 0 : i32
    return %c0_i32, %c0_i32_0 : i32, i32
  }
  func.func @transform_4(%arg0: i32) -> (i32, i32) {
    %c0_i32 = arith.constant 0 : i32
    %c0_i32_0 = arith.constant 0 : i32
    %c0_i32_1 = arith.constant 0 : i32
    return %c0_i32, %c0_i32_0 : i32, i32
  }
  func.func @transform_5(%arg0: i32) -> (i32, i32) {
    %c0_i32 = arith.constant 0 : i32
    %c0_i32_0 = arith.constant 0 : i32
    %c0_i32_1 = arith.constant 0 : i32
    return %c0_i32, %c0_i32_0 : i32, i32
  }
  func.func @transform_6(%arg0: i32) -> (i32, i32) {
    %c0_i32 = arith.constant 0 : i32
    %c0_i32_0 = arith.constant 0 : i32
    %c0_i32_1 = arith.constant 0 : i32
    return %c0_i32, %c0_i32_0 : i32, i32
  }
  func.func @transform_7(%arg0: i32) -> (i32, i32) {
    %c0_i32 = arith.constant 0 : i32
    %c0_i32_0 = arith.constant 0 : i32
    return %arg0, %c0_i32 : i32, i32
  }
}

</mosaic_0001>

<llo_original>
// kernel: _lambda_.1
$region0: #{_lambda_.1}
  #allocation0 [shape = 'u32[]', space=smem, size = 0x4, offset = 0x4, fixed_abs, tag = 'smem constant byte address 0x4 - core index']
  #allocation1 [shape = 'u32[144,128]{1,0:T(1,128)}', space=vmem, size = 0x12000, scoped, tag = 'internal scratch']
  %s0 = inlined_call_operand.vmem [shape: f32[16,784], index: 0, kind: input, shape index: {}]
  %s1 = inlined_call_operand.vmem [shape: bf16[784,256], index: 1, kind: input, shape index: {}]
  %s2 = inlined_call_operand.vmem [shape: f32[1,256], index: 2, kind: input, shape index: {}]
  %s3 = inlined_call_operand.vmem [shape: bf16[256,256], index: 3, kind: input, shape index: {}]
  %s4 = inlined_call_operand.vmem [shape: f32[1,256], index: 4, kind: input, shape index: {}]
  %s5 = inlined_call_operand.vmem [shape: bf16[256,128], index: 5, kind: input, shape index: {}]
  %s6 = inlined_call_operand.vmem [shape: f32[1,128], index: 6, kind: input, shape index: {}]
  %s7 = inlined_call_operand.vmem [shape: bf16[16,128], index: 7, kind: output, shape index: {}]
  %s8 = sld [smem:[#allocation0]]
  $region38: #{_lambda_.1} parent=0
    _
  %s10 = ssub.s32 1, %s8
  %s11 = scalar_select 0, %s10, %s8
  // Predicated region
  $region2: #{_lambda_.1} parent=0 // pred_check
    _
  $region3: #{_lambda_.1} parent=0 // pred_check_branch
    %13 = sbr.rel (0) target = $region5
  $region4: #{_lambda_.1} parent=0 // pred_region
    _
  $region5: #{_lambda_.1} parent=0 // pred_fallthru
    _
  // Predicated region
  $region6: #{_lambda_.1} parent=0 // pred_check
    _
  $region7: #{_lambda_.1} parent=0 // pred_check_branch
    %15 = sbr.rel (0) target = $region9
  $region8: #{_lambda_.1} parent=0 // pred_region
    _
  $region9: #{_lambda_.1} parent=0 // pred_fallthru
    _
  // Predicated region
  $region10: #{_lambda_.1} parent=0 // pred_check
    _
  $region11: #{_lambda_.1} parent=0 // pred_check_branch
    %17 = sbr.rel (0) target = $region13
  $region12: #{_lambda_.1} parent=0 // pred_region
    _
  $region13: #{_lambda_.1} parent=0 // pred_fallthru
    _
  // Predicated region
  $region14: #{_lambda_.1} parent=0 // pred_check
    _
  $region15: #{_lambda_.1} parent=0 // pred_check_branch
    %19 = sbr.rel (0) target = $region17
  $region16: #{_lambda_.1} parent=0 // pred_region
    _
  $region17: #{_lambda_.1} parent=0 // pred_fallthru
    _
  // Predicated region
  $region18: #{_lambda_.1} parent=0 // pred_check
    _
  $region19: #{_lambda_.1} parent=0 // pred_check_branch
    %21 = sbr.rel (0) target = $region21
  $region20: #{_lambda_.1} parent=0 // pred_region
    _
  $region21: #{_lambda_.1} parent=0 // pred_fallthru
    _
  // Predicated region
  $region22: #{_lambda_.1} parent=0 // pred_check
    _
  $region23: #{_lambda_.1} parent=0 // pred_check_branch
    %23 = sbr.rel (0) target = $region25
  $region24: #{_lambda_.1} parent=0 // pred_region
    _
  $region25: #{_lambda_.1} parent=0 // pred_fallthru
    _
  // Predicated region
  $region26: #{_lambda_.1} parent=0 // pred_check
    _
  $region27: #{_lambda_.1} parent=0 // pred_check_branch
    %25 = sbr.rel (0) target = $region29
  $region28: #{_lambda_.1} parent=0 // pred_region
    _
  $region29: #{_lambda_.1} parent=0 // pred_fallthru
    _
  %v27 = vld [vmem:[%s0] sm:$0xff]
  %v28 = vld [vmem:[%s0 + $0x8] sm:$0xff]
  %v29 = vld [vmem:[%s0 + $0x10] sm:$0xff]
  %v30 = vld [vmem:[%s0 + $0x18] sm:$0xff]
  %v31 = vld [vmem:[%s0 + $0x20] sm:$0xff]
  %v32 = vld [vmem:[%s0 + $0x28] sm:$0xff]
  %v33 = vld [vmem:[%s0 + $0x30] sm:$0xff]
  %v34 = vld [vmem:[%s0 + $0x38] sm:$0xff]
  %v35 = vld [vmem:[%s0 + $0x40] sm:$0xff]
  %v36 = vld [vmem:[%s0 + $0x48] sm:$0xff]
  %v37 = vld [vmem:[%s0 + $0x50] sm:$0xff]
  %v38 = vld [vmem:[%s0 + $0x58] sm:$0xff]
  %v39 = vld [vmem:[%s0 + $0x60] sm:$0xff]
  %v40 = vld [vmem:[%s0 + $0x68] sm:$0xff]
  %v41 = vpack.c.bf16 %v34, %v27
  %v42 = vpack.c.bf16 %v35, %v28
  %v43 = vpack.c.bf16 %v36, %v29
  %v44 = vpack.c.bf16 %v37, %v30
  %v45 = vpack.c.bf16 %v38, %v31
  %v46 = vpack.c.bf16 %v39, %v32
  %v47 = vpack.c.bf16 %v40, %v33
  %v48 = vld [vmem:[%s1] sm:$0xff]
  %v49 = vld [vmem:[%s1 + $0x8] sm:$0xff]
  %v50 = vld [vmem:[%s1 + $0x10] sm:$0xff]
  %v51 = vld [vmem:[%s1 + $0x18] sm:$0xff]
  %v52 = vld [vmem:[%s1 + $0x20] sm:$0xff]
  %v53 = vld [vmem:[%s1 + $0x28] sm:$0xff]
  %v54 = vld [vmem:[%s1 + $0x30] sm:$0xff]
  %v55 = vld [vmem:[%s1 + $0x38] sm:$0xff]
  %v56 = vld [vmem:[%s1 + $0x40] sm:$0xff]
  %v57 = vld [vmem:[%s1 + $0x48] sm:$0xff]
  %v58 = vld [vmem:[%s1 + $0x50] sm:$0xff]
  %v59 = vld [vmem:[%s1 + $0x58] sm:$0xff]
  %v60 = vld [vmem:[%s1 + $0x60] sm:$0xff]
  %v61 = vld [vmem:[%s1 + $0x68] sm:$0xff]
  %v62 = vld [vmem:[%s1 + $0x70] sm:$0xff]
  %v63 = vld [vmem:[%s1 + $0x78] sm:$0xff]
  %v64 = vld [vmem:[%s1 + $0x80] sm:$0xff]
  %v65 = vld [vmem:[%s1 + $0x88] sm:$0xff]
  %v66 = vld [vmem:[%s1 + $0x90] sm:$0xff]
  %v67 = vld [vmem:[%s1 + $0x98] sm:$0xff]
  %v68 = vld [vmem:[%s1 + $0xa0] sm:$0xff]
  %v69 = vld [vmem:[%s1 + $0xa8] sm:$0xff]
  %v70 = vld [vmem:[%s1 + $0xb0] sm:$0xff]
  %v71 = vld [vmem:[%s1 + $0xb8] sm:$0xff]
  %v72 = vld [vmem:[%s1 + $0xc0] sm:$0xff]
  %v73 = vld [vmem:[%s1 + $0xc8] sm:$0xff]
  %v74 = vld [vmem:[%s1 + $0xd0] sm:$0xff]
  %v75 = vld [vmem:[%s1 + $0xd8] sm:$0xff]
  %v76 = vld [vmem:[%s1 + $0xe0] sm:$0xff]
  %v77 = vld [vmem:[%s1 + $0xe8] sm:$0xff]
  %v78 = vld [vmem:[%s1 + $0xf0] sm:$0xff]
  %v79 = vld [vmem:[%s1 + $0xf8] sm:$0xff]
  %v80 = vld [vmem:[%s1 + $0x100] sm:$0xff]
  %v81 = vld [vmem:[%s1 + $0x108] sm:$0xff]
  %v82 = vld [vmem:[%s1 + $0x110] sm:$0xff]
  %v83 = vld [vmem:[%s1 + $0x118] sm:$0xff]
  %v84 = vld [vmem:[%s1 + $0x120] sm:$0xff]
  %v85 = vld [vmem:[%s1 + $0x128] sm:$0xff]
  %v86 = vld [vmem:[%s1 + $0x130] sm:$0xff]
  %v87 = vld [vmem:[%s1 + $0x138] sm:$0xff]
  %v88 = vld [vmem:[%s1 + $0x140] sm:$0xff]
  %v89 = vld [vmem:[%s1 + $0x148] sm:$0xff]
  %v90 = vld [vmem:[%s1 + $0x150] sm:$0xff]
  %v91 = vld [vmem:[%s1 + $0x158] sm:$0xff]
  %v92 = vld [vmem:[%s1 + $0x160] sm:$0xff]
  %v93 = vld [vmem:[%s1 + $0x168] sm:$0xff]
  %v94 = vld [vmem:[%s1 + $0x170] sm:$0xff]
  %v95 = vld [vmem:[%s1 + $0x178] sm:$0xff]
  %v96 = vld [vmem:[%s1 + $0x180] sm:$0xff]
  %v97 = vld [vmem:[%s1 + $0x188] sm:$0xff]
  %v98 = vld [vmem:[%s1 + $0x190] sm:$0xff]
  %v99 = vld [vmem:[%s1 + $0x198] sm:$0xff]
  %v100 = vld [vmem:[%s1 + $0x1a0] sm:$0xff]
  %v101 = vld [vmem:[%s1 + $0x1a8] sm:$0xff]
  %v102 = vld [vmem:[%s1 + $0x1b0] sm:$0xff]
  %v103 = vld [vmem:[%s1 + $0x1b8] sm:$0xff]
  %v104 = vld [vmem:[%s1 + $0x1c0] sm:$0xff]
  %v105 = vld [vmem:[%s1 + $0x1c8] sm:$0xff]
  %v106 = vld [vmem:[%s1 + $0x1d0] sm:$0xff]
  %v107 = vld [vmem:[%s1 + $0x1d8] sm:$0xff]
  %v108 = vld [vmem:[%s1 + $0x1e0] sm:$0xff]
  %v109 = vld [vmem:[%s1 + $0x1e8] sm:$0xff]
  %v110 = vld [vmem:[%s1 + $0x1f0] sm:$0xff]
  %v111 = vld [vmem:[%s1 + $0x1f8] sm:$0xff]
  %v112 = vld [vmem:[%s1 + $0x200] sm:$0xff]
  %v113 = vld [vmem:[%s1 + $0x208] sm:$0xff]
  %v114 = vld [vmem:[%s1 + $0x210] sm:$0xff]
  %v115 = vld [vmem:[%s1 + $0x218] sm:$0xff]
  %v116 = vld [vmem:[%s1 + $0x220] sm:$0xff]
  %v117 = vld [vmem:[%s1 + $0x228] sm:$0xff]
  %v118 = vld [vmem:[%s1 + $0x230] sm:$0xff]
  %v119 = vld [vmem:[%s1 + $0x238] sm:$0xff]
  %v120 = vld [vmem:[%s1 + $0x240] sm:$0xff]
  %v121 = vld [vmem:[%s1 + $0x248] sm:$0xff]
  %v122 = vld [vmem:[%s1 + $0x250] sm:$0xff]
  %v123 = vld [vmem:[%s1 + $0x258] sm:$0xff]
  %v124 = vld [vmem:[%s1 + $0x260] sm:$0xff]
  %v125 = vld [vmem:[%s1 + $0x268] sm:$0xff]
  %v126 = vld [vmem:[%s1 + $0x270] sm:$0xff]
  %v127 = vld [vmem:[%s1 + $0x278] sm:$0xff]
  %v128 = vld [vmem:[%s1 + $0x280] sm:$0xff]
  %v129 = vld [vmem:[%s1 + $0x288] sm:$0xff]
  %v130 = vld [vmem:[%s1 + $0x290] sm:$0xff]
  %v131 = vld [vmem:[%s1 + $0x298] sm:$0xff]
  %v132 = vld [vmem:[%s1 + $0x2a0] sm:$0xff]
  %v133 = vld [vmem:[%s1 + $0x2a8] sm:$0xff]
  %v134 = vld [vmem:[%s1 + $0x2b0] sm:$0xff]
  %v135 = vld [vmem:[%s1 + $0x2b8] sm:$0xff]
  %v136 = vld [vmem:[%s1 + $0x2c0] sm:$0xff]
  %v137 = vld [vmem:[%s1 + $0x2c8] sm:$0xff]
  %v138 = vld [vmem:[%s1 + $0x2d0] sm:$0xff]
  %v139 = vld [vmem:[%s1 + $0x2d8] sm:$0xff]
  %v140 = vld [vmem:[%s1 + $0x2e0] sm:$0xff]
  %v141 = vld [vmem:[%s1 + $0x2e8] sm:$0xff]
  %v142 = vld [vmem:[%s1 + $0x2f0] sm:$0xff]
  %v143 = vld [vmem:[%s1 + $0x2f8] sm:$0xff]
  %v144 = vld [vmem:[%s1 + $0x300] sm:$0xff]
  %v145 = vld [vmem:[%s1 + $0x308] sm:$0xff]
  %v146 = vld [vmem:[%s2] sm:$0x3]
  %v148 = vlaneseq
  %v149 = vshrl.u32 %v148, 7
  %v150 = vsub.s32 0, %v149
  %v151 = vrot.slane %v146, %v150
  %v152 = vlaneseq
  %v153 = vshrl.u32 %v152, 7
  %v154 = vsub.s32 1, %v153
  %v155 = vrot.slane %v146, %v154
  %v256 = vunpack.c.l.b16 %v48
  %v257 = vunpack.c.h.b16 %v48
  %v258 = vunpack.c.l.b16 %v49
  %v259 = vunpack.c.h.b16 %v49
  %v260 = vunpack.c.l.b16 %v50
  %v261 = vunpack.c.h.b16 %v50
  %v262 = vunpack.c.l.b16 %v51
  %v263 = vunpack.c.h.b16 %v51
  %v264 = vunpack.c.l.b16 %v52
  %v265 = vunpack.c.h.b16 %v52
  %v266 = vunpack.c.l.b16 %v53
  %v267 = vunpack.c.h.b16 %v53
  %v268 = vunpack.c.l.b16 %v54
  %v269 = vunpack.c.h.b16 %v54
  %v270 = vunpack.c.l.b16 %v55
  %v271 = vunpack.c.h.b16 %v55
  %v272 = vunpack.c.l.b16 %v56
  %v273 = vunpack.c.h.b16 %v56
  %v274 = vunpack.c.l.b16 %v57
  %v275 = vunpack.c.h.b16 %v57
  %v276 = vunpack.c.l.b16 %v58
  %v277 = vunpack.c.h.b16 %v58
  %v278 = vunpack.c.l.b16 %v59
  %v279 = vunpack.c.h.b16 %v59
  %v280 = vunpack.c.l.b16 %v60
  %v281 = vunpack.c.h.b16 %v60
  %v282 = vunpack.c.l.b16 %v61
  %v283 = vunpack.c.h.b16 %v61
  %v284 = vunpack.c.l.b16 %v62
  %v285 = vunpack.c.h.b16 %v62
  %v286 = vunpack.c.l.b16 %v63
  %v287 = vunpack.c.h.b16 %v63
  %v288 = vunpack.c.l.b16 %v64
  %v289 = vunpack.c.h.b16 %v64
  %v290 = vunpack.c.l.b16 %v65
  %v291 = vunpack.c.h.b16 %v65
  %v292 = vunpack.c.l.b16 %v66
  %v293 = vunpack.c.h.b16 %v66
  %v294 = vunpack.c.l.b16 %v67
  %v295 = vunpack.c.h.b16 %v67
  %v296 = vunpack.c.l.b16 %v68
  %v297 = vunpack.c.h.b16 %v68
  %v298 = vunpack.c.l.b16 %v69
  %v299 = vunpack.c.h.b16 %v69
  %v300 = vunpack.c.l.b16 %v70
  %v301 = vunpack.c.h.b16 %v70
  %v302 = vunpack.c.l.b16 %v71
  %v303 = vunpack.c.h.b16 %v71
  %v304 = vunpack.c.l.b16 %v72
  %v305 = vunpack.c.h.b16 %v72
  %v306 = vunpack.c.l.b16 %v73
  %v307 = vunpack.c.h.b16 %v73
  %v308 = vunpack.c.l.b16 %v74
  %v309 = vunpack.c.h.b16 %v74
  %v310 = vunpack.c.l.b16 %v75
  %v311 = vunpack.c.h.b16 %v75
  %v312 = vunpack.c.l.b16 %v76
  %v313 = vunpack.c.h.b16 %v76
  %v314 = vunpack.c.l.b16 %v77
  %v315 = vunpack.c.h.b16 %v77
  %v316 = vunpack.c.l.b16 %v78
  %v317 = vunpack.c.h.b16 %v78
  %v318 = vunpack.c.l.b16 %v79
  %v319 = vunpack.c.h.b16 %v79
  %v320 = vunpack.c.l.b16 %v80
  %v321 = vunpack.c.h.b16 %v80
  %v322 = vunpack.c.l.b16 %v81
  %v323 = vunpack.c.h.b16 %v81
  %v324 = vunpack.c.l.b16 %v82
  %v325 = vunpack.c.h.b16 %v82
  %v326 = vunpack.c.l.b16 %v83
  %v327 = vunpack.c.h.b16 %v83
  %v328 = vunpack.c.l.b16 %v84
  %v329 = vunpack.c.h.b16 %v84
  %v330 = vunpack.c.l.b16 %v85
  %v331 = vunpack.c.h.b16 %v85
  %v332 = vunpack.c.l.b16 %v86
  %v333 = vunpack.c.h.b16 %v86
  %v334 = vunpack.c.l.b16 %v87
  %v335 = vunpack.c.h.b16 %v87
  %v336 = vunpack.c.l.b16 %v88
  %v337 = vunpack.c.h.b16 %v88
  %v338 = vunpack.c.l.b16 %v89
  %v339 = vunpack.c.h.b16 %v89
  %v340 = vunpack.c.l.b16 %v90
  %v341 = vunpack.c.h.b16 %v90
  %v342 = vunpack.c.l.b16 %v91
  %v343 = vunpack.c.h.b16 %v91
  %v344 = vunpack.c.l.b16 %v92
  %v345 = vunpack.c.h.b16 %v92
  %v346 = vunpack.c.l.b16 %v93
  %v347 = vunpack.c.h.b16 %v93
  %v348 = vunpack.c.l.b16 %v94
  %v349 = vunpack.c.h.b16 %v94
  %v350 = vunpack.c.l.b16 %v95
  %v351 = vunpack.c.h.b16 %v95
  %v352 = vunpack.c.l.b16 %v96
  %v353 = vunpack.c.h.b16 %v96
  %v354 = vunpack.c.l.b16 %v97
  %v355 = vunpack.c.h.b16 %v97
  %v356 = vunpack.c.l.b16 %v98
  %v357 = vunpack.c.h.b16 %v98
  %v358 = vunpack.c.l.b16 %v99
  %v359 = vunpack.c.h.b16 %v99
  %v360 = vunpack.c.l.b16 %v100
  %v361 = vunpack.c.h.b16 %v100
  %v362 = vunpack.c.l.b16 %v101
  %v363 = vunpack.c.h.b16 %v101
  %v364 = vunpack.c.l.b16 %v102
  %v365 = vunpack.c.h.b16 %v102
  %v366 = vunpack.c.l.b16 %v103
  %v367 = vunpack.c.h.b16 %v103
  %v368 = vunpack.c.l.b16 %v104
  %v369 = vunpack.c.h.b16 %v104
  %v370 = vunpack.c.l.b16 %v105
  %v371 = vunpack.c.h.b16 %v105
  %v372 = vunpack.c.l.b16 %v106
  %v373 = vunpack.c.h.b16 %v106
  %v374 = vunpack.c.l.b16 %v107
  %v375 = vunpack.c.h.b16 %v107
  %v376 = vunpack.c.l.b16 %v108
  %v377 = vunpack.c.h.b16 %v108
  %v378 = vunpack.c.l.b16 %v109
  %v379 = vunpack.c.h.b16 %v109
  %v380 = vunpack.c.l.b16 %v110
  %v381 = vunpack.c.h.b16 %v110
  %v382 = vunpack.c.l.b16 %v111
  %v383 = vunpack.c.h.b16 %v111
  %v384 = vunpack.c.l.b16 %v112
  %v385 = vunpack.c.h.b16 %v112
  %v386 = vunpack.c.l.b16 %v113
  %v387 = vunpack.c.h.b16 %v113
  %v388 = vunpack.c.l.b16 %v114
  %v389 = vunpack.c.h.b16 %v114
  %v390 = vunpack.c.l.b16 %v115
  %v391 = vunpack.c.h.b16 %v115
  %v392 = vunpack.c.l.b16 %v116
  %v393 = vunpack.c.h.b16 %v116
  %v394 = vunpack.c.l.b16 %v117
  %v395 = vunpack.c.h.b16 %v117
  %v396 = vunpack.c.l.b16 %v118
  %v397 = vunpack.c.h.b16 %v118
  %v398 = vunpack.c.l.b16 %v119
  %v399 = vunpack.c.h.b16 %v119
  %v400 = vunpack.c.l.b16 %v120
  %v401 = vunpack.c.h.b16 %v120
  %v402 = vunpack.c.l.b16 %v121
  %v403 = vunpack.c.h.b16 %v121
  %v404 = vunpack.c.l.b16 %v122
  %v405 = vunpack.c.h.b16 %v122
  %v406 = vunpack.c.l.b16 %v123
  %v407 = vunpack.c.h.b16 %v123
  %v408 = vunpack.c.l.b16 %v124
  %v409 = vunpack.c.h.b16 %v124
  %v410 = vunpack.c.l.b16 %v125
  %v411 = vunpack.c.h.b16 %v125
  %v412 = vunpack.c.l.b16 %v126
  %v413 = vunpack.c.h.b16 %v126
  %v414 = vunpack.c.l.b16 %v127
  %v415 = vunpack.c.h.b16 %v127
  %v416 = vunpack.c.l.b16 %v128
  %v417 = vunpack.c.h.b16 %v128
  %v418 = vunpack.c.l.b16 %v129
  %v419 = vunpack.c.h.b16 %v129
  %v420 = vunpack.c.l.b16 %v130
  %v421 = vunpack.c.h.b16 %v130
  %v422 = vunpack.c.l.b16 %v131
  %v423 = vunpack.c.h.b16 %v131
  %v424 = vunpack.c.l.b16 %v132
  %v425 = vunpack.c.h.b16 %v132
  %v426 = vunpack.c.l.b16 %v133
  %v427 = vunpack.c.h.b16 %v133
  %v428 = vunpack.c.l.b16 %v134
  %v429 = vunpack.c.h.b16 %v134
  %v430 = vunpack.c.l.b16 %v135
  %v431 = vunpack.c.h.b16 %v135
  %v432 = vunpack.c.l.b16 %v136
  %v433 = vunpack.c.h.b16 %v136
  %v434 = vunpack.c.l.b16 %v137
  %v435 = vunpack.c.h.b16 %v137
  %v436 = vunpack.c.l.b16 %v138
  %v437 = vunpack.c.h.b16 %v138
  %v438 = vunpack.c.l.b16 %v139
  %v439 = vunpack.c.h.b16 %v139
  %v440 = vunpack.c.l.b16 %v140
  %v441 = vunpack.c.h.b16 %v140
  %v442 = vunpack.c.l.b16 %v141
  %v443 = vunpack.c.h.b16 %v141
  %v444 = vunpack.c.l.b16 %v142
  %v445 = vunpack.c.h.b16 %v142
  %v446 = vunpack.c.l.b16 %v143
  %v447 = vunpack.c.h.b16 %v143
  %v448 = vunpack.c.l.b16 %v144
  %v449 = vunpack.c.h.b16 %v144
  %v450 = vunpack.c.l.b16 %v145
  %v451 = vunpack.c.h.b16 %v145
  %v452 = vpack.c.b16 %v258, %v256
  %v453 = vpack.c.b16 %v259, %v257
  %v454 = vpack.c.b16 %v262, %v260
  %v455 = vpack.c.b16 %v263, %v261
  %v456 = vpack.c.b16 %v266, %v264
  %v457 = vpack.c.b16 %v267, %v265
  %v458 = vpack.c.b16 %v270, %v268
  %v459 = vpack.c.b16 %v271, %v269
  %v460 = vpack.c.b16 %v274, %v272
  %v461 = vpack.c.b16 %v275, %v273
  %v462 = vpack.c.b16 %v278, %v276
  %v463 = vpack.c.b16 %v279, %v277
  %v464 = vpack.c.b16 %v282, %v280
  %v465 = vpack.c.b16 %v283, %v281
  %v466 = vpack.c.b16 %v286, %v284
  %v467 = vpack.c.b16 %v287, %v285
  %v468 = vpack.c.b16 %v290, %v288
  %v469 = vpack.c.b16 %v291, %v289
  %v470 = vpack.c.b16 %v294, %v292
  %v471 = vpack.c.b16 %v295, %v293
  %v472 = vpack.c.b16 %v298, %v296
  %v473 = vpack.c.b16 %v299, %v297
  %v474 = vpack.c.b16 %v302, %v300
  %v475 = vpack.c.b16 %v303, %v301
  %v476 = vpack.c.b16 %v306, %v304
  %v477 = vpack.c.b16 %v307, %v305
  %v478 = vpack.c.b16 %v310, %v308
  %v479 = vpack.c.b16 %v311, %v309
  %v480 = vpack.c.b16 %v314, %v312
  %v481 = vpack.c.b16 %v315, %v313
  %v482 = vpack.c.b16 %v318, %v316
  %v483 = vpack.c.b16 %v319, %v317
  %v484 = vpack.c.b16 %v322, %v320
  %v485 = vpack.c.b16 %v323, %v321
  %v486 = vpack.c.b16 %v326, %v324
  %v487 = vpack.c.b16 %v327, %v325
  %v488 = vpack.c.b16 %v330, %v328
  %v489 = vpack.c.b16 %v331, %v329
  %v490 = vpack.c.b16 %v334, %v332
  %v491 = vpack.c.b16 %v335, %v333
  %v492 = vpack.c.b16 %v338, %v336
  %v493 = vpack.c.b16 %v339, %v337
  %v494 = vpack.c.b16 %v342, %v340
  %v495 = vpack.c.b16 %v343, %v341
  %v496 = vpack.c.b16 %v346, %v344
  %v497 = vpack.c.b16 %v347, %v345
  %v498 = vpack.c.b16 %v350, %v348
  %v499 = vpack.c.b16 %v351, %v349
  %v500 = vpack.c.b16 %v354, %v352
  %v501 = vpack.c.b16 %v355, %v353
  %v502 = vpack.c.b16 %v358, %v356
  %v503 = vpack.c.b16 %v359, %v357
  %v504 = vpack.c.b16 %v362, %v360
  %v505 = vpack.c.b16 %v363, %v361
  %v506 = vpack.c.b16 %v366, %v364
  %v507 = vpack.c.b16 %v367, %v365
  %v508 = vpack.c.b16 %v370, %v368
  %v509 = vpack.c.b16 %v371, %v369
  %v510 = vpack.c.b16 %v374, %v372
  %v511 = vpack.c.b16 %v375, %v373
  %v512 = vpack.c.b16 %v378, %v376
  %v513 = vpack.c.b16 %v379, %v377
  %v514 = vpack.c.b16 %v382, %v380
  %v515 = vpack.c.b16 %v383, %v381
  %v516 = vpack.c.b16 %v386, %v384
  %v517 = vpack.c.b16 %v387, %v385
  %v518 = vpack.c.b16 %v390, %v388
  %v519 = vpack.c.b16 %v391, %v389
  %v520 = vpack.c.b16 %v394, %v392
  %v521 = vpack.c.b16 %v395, %v393
  %v522 = vpack.c.b16 %v398, %v396
  %v523 = vpack.c.b16 %v399, %v397
  %v524 = vpack.c.b16 %v402, %v400
  %v525 = vpack.c.b16 %v403, %v401
  %v526 = vpack.c.b16 %v406, %v404
  %v527 = vpack.c.b16 %v407, %v405
  %v528 = vpack.c.b16 %v410, %v408
  %v529 = vpack.c.b16 %v411, %v409
  %v530 = vpack.c.b16 %v414, %v412
  %v531 = vpack.c.b16 %v415, %v413
  %v532 = vpack.c.b16 %v418, %v416
  %v533 = vpack.c.b16 %v419, %v417
  %v534 = vpack.c.b16 %v422, %v420
  %v535 = vpack.c.b16 %v423, %v421
  %v536 = vpack.c.b16 %v426, %v424
  %v537 = vpack.c.b16 %v427, %v425
  %v538 = vpack.c.b16 %v430, %v428
  %v539 = vpack.c.b16 %v431, %v429
  %v540 = vpack.c.b16 %v434, %v432
  %v541 = vpack.c.b16 %v435, %v433
  %v542 = vpack.c.b16 %v438, %v436
  %v543 = vpack.c.b16 %v439, %v437
  %v544 = vpack.c.b16 %v442, %v440
  %v545 = vpack.c.b16 %v443, %v441
  %v546 = vpack.c.b16 %v446, %v444
  %v547 = vpack.c.b16 %v447, %v445
  %v548 = vpack.c.b16 %v450, %v448
  %v549 = vpack.c.b16 %v451, %v449
  %vm648 = vcmask 130048
  %v650 = vsel %vm648, %v47, 0
  %652 = vmatprep.subr.bf16.mxu0 %v453
  %653 = vmatpush1.bf16.msra.mxu0 %v452
  %654 = vmatprep.subr.bf16.mxu0 %v455
  %655 = vmatpush1.bf16.msra.mxu0 %v454
  %656 = vmatprep.subr.bf16.mxu0 %v457
  %657 = vmatpush1.bf16.msra.mxu0 %v456
  %658 = vmatprep.subr.bf16.mxu0 %v459
  %659 = vmatpush1.bf16.msra.mxu0 %v458
  %660 = vmatprep.subr.bf16.mxu0 %v461
  %661 = vmatpush1.bf16.msra.mxu0 %v460
  %662 = vmatprep.subr.bf16.mxu0 %v463
  %663 = vmatpush1.bf16.msra.mxu0 %v462
  %664 = vmatprep.subr.bf16.mxu0 %v465
  %665 = vmatpush1.bf16.msra.mxu0 %v464
  %666 = vmatprep.subr.bf16.mxu0 %v467
  %667 = vmatpush1.bf16.msra.mxu0 %v466
  %668 = vmatprep.subr.bf16.mxu0 %v469
  %669 = vmatpush1.bf16.msra.mxu0 %v468
  %670 = vmatprep.subr.bf16.mxu0 %v471
  %671 = vmatpush1.bf16.msra.mxu0 %v470
  %672 = vmatprep.subr.bf16.mxu0 %v473
  %673 = vmatpush1.bf16.msra.mxu0 %v472
  %674 = vmatprep.subr.bf16.mxu0 %v475
  %675 = vmatpush1.bf16.msra.mxu0 %v474
  %676 = vmatprep.subr.bf16.mxu0 %v477
  %677 = vmatpush1.bf16.msra.mxu0 %v476
  %678 = vmatprep.subr.bf16.mxu0 %v479
  %679 = vmatpush1.bf16.msra.mxu0 %v478
  %680 = vmatprep.subr.bf16.mxu0 %v481
  %681 = vmatpush1.bf16.msra.mxu0 %v480
  %682 = vmatprep.subr.bf16.mxu0 %v483
  %683 = vmatpush1.bf16.msra.mxu0 %v482
  %684 = vmatprep.mubr.bf16.mxu0 %v42
  %685 = vmatmul.mubr.bf16.gmra.mrb[0].mxu0 %v41
  %v686 = vpop.f32.mrb[0].mxu0
  %v687 = vadd.f32 %v151, %v686
  %v688 = vpop.f32.mrb[0].mxu0
  %v689 = vadd.f32 %v155, %v688
  %v690 = vpop.f32.mrb[0].mxu0
  %v691 = vadd.f32 %v151, %v690
  %v692 = vpop.f32.mrb[0].mxu0
  %v693 = vadd.f32 %v155, %v692
  %694 = vdwg.mxu0
  %695 = vmatprep.subr.bf16.mxu0 %v485
  %696 = vmatpush1.bf16.msra.mxu0 %v484
  %697 = vmatprep.subr.bf16.mxu0 %v487
  %698 = vmatpush1.bf16.msra.mxu0 %v486
  %699 = vmatprep.subr.bf16.mxu0 %v489
  %700 = vmatpush1.bf16.msra.mxu0 %v488
  %701 = vmatprep.subr.bf16.mxu0 %v491
  %702 = vmatpush1.bf16.msra.mxu0 %v490
  %703 = vmatprep.subr.bf16.mxu0 %v493
  %704 = vmatpush1.bf16.msra.mxu0 %v492
  %705 = vmatprep.subr.bf16.mxu0 %v495
  %706 = vmatpush1.bf16.msra.mxu0 %v494
  %707 = vmatprep.subr.bf16.mxu0 %v497
  %708 = vmatpush1.bf16.msra.mxu0 %v496
  %709 = vmatprep.subr.bf16.mxu0 %v499
  %710 = vmatpush1.bf16.msra.mxu0 %v498
  %711 = vmatprep.subr.bf16.mxu0 %v501
  %712 = vmatpush1.bf16.msra.mxu0 %v500
  %713 = vmatprep.subr.bf16.mxu0 %v503
  %714 = vmatpush1.bf16.msra.mxu0 %v502
  %715 = vmatprep.subr.bf16.mxu0 %v505
  %716 = vmatpush1.bf16.msra.mxu0 %v504
  %717 = vmatprep.subr.bf16.mxu0 %v507
  %718 = vmatpush1.bf16.msra.mxu0 %v506
  %719 = vmatprep.subr.bf16.mxu0 %v509
  %720 = vmatpush1.bf16.msra.mxu0 %v508
  %721 = vmatprep.subr.bf16.mxu0 %v511
  %722 = vmatpush1.bf16.msra.mxu0 %v510
  %723 = vmatprep.subr.bf16.mxu0 %v513
  %724 = vmatpush1.bf16.msra.mxu0 %v512
  %725 = vmatprep.subr.bf16.mxu0 %v515
  %726 = vmatpush1.bf16.msra.mxu0 %v514
  %727 = vmatprep.mubr.bf16.mxu0 %v44
  %728 = vmatmul.mubr.bf16.gmra.mrb[0].mxu0 %v43
  %v729 = vpop.f32.mrb[0].mxu0
  %v730 = vadd.f32 %v687, %v729
  %v731 = vpop.f32.mrb[0].mxu0
  %v732 = vadd.f32 %v689, %v731
  %v733 = vpop.f32.mrb[0].mxu0
  %v734 = vadd.f32 %v691, %v733
  %v735 = vpop.f32.mrb[0].mxu0
  %v736 = vadd.f32 %v693, %v735
  %737 = vdwg.mxu0
  %738 = vmatprep.subr.bf16.mxu0 %v517
  %739 = vmatpush1.bf16.msra.mxu0 %v516
  %740 = vmatprep.subr.bf16.mxu0 %v519
  %741 = vmatpush1.bf16.msra.mxu0 %v518
  %742 = vmatprep.subr.bf16.mxu0 %v521
  %743 = vmatpush1.bf16.msra.mxu0 %v520
  %744 = vmatprep.subr.bf16.mxu0 %v523
  %745 = vmatpush1.bf16.msra.mxu0 %v522
  %746 = vmatprep.subr.bf16.mxu0 %v525
  %747 = vmatpush1.bf16.msra.mxu0 %v524
  %748 = vmatprep.subr.bf16.mxu0 %v527
  %749 = vmatpush1.bf16.msra.mxu0 %v526
  %750 = vmatprep.subr.bf16.mxu0 %v529
  %751 = vmatpush1.bf16.msra.mxu0 %v528
  %752 = vmatprep.subr.bf16.mxu0 %v531
  %753 = vmatpush1.bf16.msra.mxu0 %v530
  %754 = vmatprep.subr.bf16.mxu0 %v533
  %755 = vmatpush1.bf16.msra.mxu0 %v532
  %756 = vmatprep.subr.bf16.mxu0 %v535
  %757 = vmatpush1.bf16.msra.mxu0 %v534
  %758 = vmatprep.subr.bf16.mxu0 %v537
  %759 = vmatpush1.bf16.msra.mxu0 %v536
  %760 = vmatprep.subr.bf16.mxu0 %v539
  %761 = vmatpush1.bf16.msra.mxu0 %v538
  %762 = vmatprep.subr.bf16.mxu0 %v541
  %763 = vmatpush1.bf16.msra.mxu0 %v540
  %764 = vmatprep.subr.bf16.mxu0 %v543
  %765 = vmatpush1.bf16.msra.mxu0 %v542
  %766 = vmatprep.subr.bf16.mxu0 %v545
  %767 = vmatpush1.bf16.msra.mxu0 %v544
  %768 = vmatprep.subr.bf16.mxu0 %v547
  %769 = vmatpush1.bf16.msra.mxu0 %v546
  %770 = vmatprep.mubr.bf16.mxu0 %v46
  %771 = vmatmul.mubr.bf16.gmra.mrb[0].mxu0 %v45
  %v772 = vpop.f32.mrb[0].mxu0
  %v773 = vadd.f32 %v730, %v772
  %v774 = vpop.f32.mrb[0].mxu0
  %v775 = vadd.f32 %v732, %v774
  %v776 = vpop.f32.mrb[0].mxu0
  %v777 = vadd.f32 %v734, %v776
  %v778 = vpop.f32.mrb[0].mxu0
  %v779 = vadd.f32 %v736, %v778
  %780 = vdwg.mxu0
  %781 = vmatprep.subr.bf16.mxu0 %v549
  %782 = vmatpush1.bf16.msra.mxu0 %v548
  %783 = vmatprep.subr.bf16.mxu0 0
  %784 = vmatpush1.bf16.msra.mxu0 0
  %785 = vmatprep.subr.bf16.mxu0 0
  %786 = vmatpush1.bf16.msra.mxu0 0
  %787 = vmatprep.subr.bf16.mxu0 0
  %788 = vmatpush1.bf16.msra.mxu0 0
  %789 = vmatprep.subr.bf16.mxu0 0
  %790 = vmatpush1.bf16.msra.mxu0 0
  %791 = vmatprep.subr.bf16.mxu0 0
  %792 = vmatpush1.bf16.msra.mxu0 0
  %793 = vmatprep.subr.bf16.mxu0 0
  %794 = vmatpush1.bf16.msra.mxu0 0
  %795 = vmatprep.subr.bf16.mxu0 0
  %796 = vmatpush1.bf16.msra.mxu0 0
  %797 = vmatprep.subr.bf16.mxu0 0
  %798 = vmatpush1.bf16.msra.mxu0 0
  %799 = vmatprep.subr.bf16.mxu0 0
  %800 = vmatpush1.bf16.msra.mxu0 0
  %801 = vmatprep.subr.bf16.mxu0 0
  %802 = vmatpush1.bf16.msra.mxu0 0
  %803 = vmatprep.subr.bf16.mxu0 0
  %804 = vmatpush1.bf16.msra.mxu0 0
  %805 = vmatprep.subr.bf16.mxu0 0
  %806 = vmatpush1.bf16.msra.mxu0 0
  %807 = vmatprep.subr.bf16.mxu0 0
  %808 = vmatpush1.bf16.msra.mxu0 0
  %809 = vmatprep.subr.bf16.mxu0 0
  %810 = vmatpush1.bf16.msra.mxu0 0
  %811 = vmatprep.subr.bf16.mxu0 0
  %812 = vmatpush1.bf16.msra.mxu0 0
  %813 = vmatprep.mubr.bf16.mxu0 0
  %814 = vmatmul.mubr.bf16.gmra.mrb[0].mxu0 %v650
  %v815 = vpop.f32.mrb[0].mxu0
  %v816 = vadd.f32 %v773, %v815
  %v817 = vpop.f32.mrb[0].mxu0
  %v818 = vadd.f32 %v775, %v817
  %v819 = vpop.f32.mrb[0].mxu0
  %v820 = vadd.f32 %v777, %v819
  %v821 = vpop.f32.mrb[0].mxu0
  %v822 = vadd.f32 %v779, %v821
  %823 = vdwg.mxu0
  %vm824 = vcmp.gt.f32.partialorder %v816, 0.0
  %vm825 = vcmp.gt.f32.partialorder %v818, 0.0
  %vm826 = vcmp.gt.f32.partialorder %v820, 0.0
  %vm827 = vcmp.gt.f32.partialorder %v822, 0.0
  %v828 = vmul.f32 %v816, 0.2
  %v829 = vmul.f32 %v818, 0.2
  %v830 = vmul.f32 %v820, 0.2
  %v831 = vmul.f32 %v822, 0.2
  %v832 = vsel %vm824, %v816, %v828
  %v833 = vsel %vm825, %v818, %v829
  %v834 = vsel %vm826, %v820, %v830
  %v835 = vsel %vm827, %v822, %v831
  %v836 = vpack.c.bf16 %v834, %v832
  %v837 = vpack.c.bf16 %v835, %v833
  %v838 = vld [vmem:[%s3] sm:$0xff]
  %v839 = vld [vmem:[%s3 + $0x8] sm:$0xff]
  %v840 = vld [vmem:[%s3 + $0x10] sm:$0xff]
  %v841 = vld [vmem:[%s3 + $0x18] sm:$0xff]
  %v842 = vld [vmem:[%s3 + $0x20] sm:$0xff]
  %v843 = vld [vmem:[%s3 + $0x28] sm:$0xff]
  %v844 = vld [vmem:[%s3 + $0x30] sm:$0xff]
  %v845 = vld [vmem:[%s3 + $0x38] sm:$0xff]
  %v846 = vld [vmem:[%s3 + $0x40] sm:$0xff]
  %v847 = vld [vmem:[%s3 + $0x48] sm:$0xff]
  %v848 = vld [vmem:[%s3 + $0x50] sm:$0xff]
  %v849 = vld [vmem:[%s3 + $0x58] sm:$0xff]
  %v850 = vld [vmem:[%s3 + $0x60] sm:$0xff]
  %v851 = vld [vmem:[%s3 + $0x68] sm:$0xff]
  %v852 = vld [vmem:[%s3 + $0x70] sm:$0xff]
  %v853 = vld [vmem:[%s3 + $0x78] sm:$0xff]
  %v854 = vld [vmem:[%s3 + $0x80] sm:$0xff]
  %v855 = vld [vmem:[%s3 + $0x88] sm:$0xff]
  %v856 = vld [vmem:[%s3 + $0x90] sm:$0xff]
  %v857 = vld [vmem:[%s3 + $0x98] sm:$0xff]
  %v858 = vld [vmem:[%s3 + $0xa0] sm:$0xff]
  %v859 = vld [vmem:[%s3 + $0xa8] sm:$0xff]
  %v860 = vld [vmem:[%s3 + $0xb0] sm:$0xff]
  %v861 = vld [vmem:[%s3 + $0xb8] sm:$0xff]
  %v862 = vld [vmem:[%s3 + $0xc0] sm:$0xff]
  %v863 = vld [vmem:[%s3 + $0xc8] sm:$0xff]
  %v864 = vld [vmem:[%s3 + $0xd0] sm:$0xff]
  %v865 = vld [vmem:[%s3 + $0xd8] sm:$0xff]
  %v866 = vld [vmem:[%s3 + $0xe0] sm:$0xff]
  %v867 = vld [vmem:[%s3 + $0xe8] sm:$0xff]
  %v868 = vld [vmem:[%s3 + $0xf0] sm:$0xff]
  %v869 = vld [vmem:[%s3 + $0xf8] sm:$0xff]
  %v870 = vld [vmem:[%s4] sm:$0x3]
  %v872 = vlaneseq
  %v873 = vshrl.u32 %v872, 7
  %v874 = vsub.s32 0, %v873
  %v875 = vrot.slane %v870, %v874
  %v876 = vlaneseq
  %v877 = vshrl.u32 %v876, 7
  %v878 = vsub.s32 1, %v877
  %v879 = vrot.slane %v870, %v878
  %v914 = vunpack.c.l.b16 %v838
  %v915 = vunpack.c.h.b16 %v838
  %v916 = vunpack.c.l.b16 %v839
  %v917 = vunpack.c.h.b16 %v839
  %v918 = vunpack.c.l.b16 %v840
  %v919 = vunpack.c.h.b16 %v840
  %v920 = vunpack.c.l.b16 %v841
  %v921 = vunpack.c.h.b16 %v841
  %v922 = vunpack.c.l.b16 %v842
  %v923 = vunpack.c.h.b16 %v842
  %v924 = vunpack.c.l.b16 %v843
  %v925 = vunpack.c.h.b16 %v843
  %v926 = vunpack.c.l.b16 %v844
  %v927 = vunpack.c.h.b16 %v844
  %v928 = vunpack.c.l.b16 %v845
  %v929 = vunpack.c.h.b16 %v845
  %v930 = vunpack.c.l.b16 %v846
  %v931 = vunpack.c.h.b16 %v846
  %v932 = vunpack.c.l.b16 %v847
  %v933 = vunpack.c.h.b16 %v847
  %v934 = vunpack.c.l.b16 %v848
  %v935 = vunpack.c.h.b16 %v848
  %v936 = vunpack.c.l.b16 %v849
  %v937 = vunpack.c.h.b16 %v849
  %v938 = vunpack.c.l.b16 %v850
  %v939 = vunpack.c.h.b16 %v850
  %v940 = vunpack.c.l.b16 %v851
  %v941 = vunpack.c.h.b16 %v851
  %v942 = vunpack.c.l.b16 %v852
  %v943 = vunpack.c.h.b16 %v852
  %v944 = vunpack.c.l.b16 %v853
  %v945 = vunpack.c.h.b16 %v853
  %v946 = vunpack.c.l.b16 %v854
  %v947 = vunpack.c.h.b16 %v854
  %v948 = vunpack.c.l.b16 %v855
  %v949 = vunpack.c.h.b16 %v855
  %v950 = vunpack.c.l.b16 %v856
  %v951 = vunpack.c.h.b16 %v856
  %v952 = vunpack.c.l.b16 %v857
  %v953 = vunpack.c.h.b16 %v857
  %v954 = vunpack.c.l.b16 %v858
  %v955 = vunpack.c.h.b16 %v858
  %v956 = vunpack.c.l.b16 %v859
  %v957 = vunpack.c.h.b16 %v859
  %v958 = vunpack.c.l.b16 %v860
  %v959 = vunpack.c.h.b16 %v860
  %v960 = vunpack.c.l.b16 %v861
  %v961 = vunpack.c.h.b16 %v861
  %v962 = vunpack.c.l.b16 %v862
  %v963 = vunpack.c.h.b16 %v862
  %v964 = vunpack.c.l.b16 %v863
  %v965 = vunpack.c.h.b16 %v863
  %v966 = vunpack.c.l.b16 %v864
  %v967 = vunpack.c.h.b16 %v864
  %v968 = vunpack.c.l.b16 %v865
  %v969 = vunpack.c.h.b16 %v865
  %v970 = vunpack.c.l.b16 %v866
  %v971 = vunpack.c.h.b16 %v866
  %v972 = vunpack.c.l.b16 %v867
  %v973 = vunpack.c.h.b16 %v867
  %v974 = vunpack.c.l.b16 %v868
  %v975 = vunpack.c.h.b16 %v868
  %v976 = vunpack.c.l.b16 %v869
  %v977 = vunpack.c.h.b16 %v869
  %v978 = vpack.c.b16 %v916, %v914
  %v979 = vpack.c.b16 %v917, %v915
  %v980 = vpack.c.b16 %v920, %v918
  %v981 = vpack.c.b16 %v921, %v919
  %v982 = vpack.c.b16 %v924, %v922
  %v983 = vpack.c.b16 %v925, %v923
  %v984 = vpack.c.b16 %v928, %v926
  %v985 = vpack.c.b16 %v929, %v927
  %v986 = vpack.c.b16 %v932, %v930
  %v987 = vpack.c.b16 %v933, %v931
  %v988 = vpack.c.b16 %v936, %v934
  %v989 = vpack.c.b16 %v937, %v935
  %v990 = vpack.c.b16 %v940, %v938
  %v991 = vpack.c.b16 %v941, %v939
  %v992 = vpack.c.b16 %v944, %v942
  %v993 = vpack.c.b16 %v945, %v943
  %v994 = vpack.c.b16 %v948, %v946
  %v995 = vpack.c.b16 %v949, %v947
  %v996 = vpack.c.b16 %v952, %v950
  %v997 = vpack.c.b16 %v953, %v951
  %v998 = vpack.c.b16 %v956, %v954
  %v999 = vpack.c.b16 %v957, %v955
  %v1000 = vpack.c.b16 %v960, %v958
  %v1001 = vpack.c.b16 %v961, %v959
  %v1002 = vpack.c.b16 %v964, %v962
  %v1003 = vpack.c.b16 %v965, %v963
  %v1004 = vpack.c.b16 %v968, %v966
  %v1005 = vpack.c.b16 %v969, %v967
  %v1006 = vpack.c.b16 %v972, %v970
  %v1007 = vpack.c.b16 %v973, %v971
  %v1008 = vpack.c.b16 %v976, %v974
  %v1009 = vpack.c.b16 %v977, %v975
  %1042 = vmatprep.subr.bf16.mxu0 %v979
  %1043 = vmatpush1.bf16.msra.mxu0 %v978
  %1044 = vmatprep.subr.bf16.mxu0 %v981
  %1045 = vmatpush1.bf16.msra.mxu0 %v980
  %1046 = vmatprep.subr.bf16.mxu0 %v983
  %1047 = vmatpush1.bf16.msra.mxu0 %v982
  %1048 = vmatprep.subr.bf16.mxu0 %v985
  %1049 = vmatpush1.bf16.msra.mxu0 %v984
  %1050 = vmatprep.subr.bf16.mxu0 %v987
  %1051 = vmatpush1.bf16.msra.mxu0 %v986
  %1052 = vmatprep.subr.bf16.mxu0 %v989
  %1053 = vmatpush1.bf16.msra.mxu0 %v988
  %1054 = vmatprep.subr.bf16.mxu0 %v991
  %1055 = vmatpush1.bf16.msra.mxu0 %v990
  %1056 = vmatprep.subr.bf16.mxu0 %v993
  %1057 = vmatpush1.bf16.msra.mxu0 %v992
  %1058 = vmatprep.subr.bf16.mxu0 %v995
  %1059 = vmatpush1.bf16.msra.mxu0 %v994
  %1060 = vmatprep.subr.bf16.mxu0 %v997
  %1061 = vmatpush1.bf16.msra.mxu0 %v996
  %1062 = vmatprep.subr.bf16.mxu0 %v999
  %1063 = vmatpush1.bf16.msra.mxu0 %v998
  %1064 = vmatprep.subr.bf16.mxu0 %v1001
  %1065 = vmatpush1.bf16.msra.mxu0 %v1000
  %1066 = vmatprep.subr.bf16.mxu0 %v1003
  %1067 = vmatpush1.bf16.msra.mxu0 %v1002
  %1068 = vmatprep.subr.bf16.mxu0 %v1005
  %1069 = vmatpush1.bf16.msra.mxu0 %v1004
  %1070 = vmatprep.subr.bf16.mxu0 %v1007
  %1071 = vmatpush1.bf16.msra.mxu0 %v1006
  %1072 = vmatprep.subr.bf16.mxu0 %v1009
  %1073 = vmatpush1.bf16.msra.mxu0 %v1008
  %1074 = vmatprep.mubr.bf16.mxu0 %v837
  %1075 = vmatmul.mubr.bf16.gmra.mrb[0].mxu0 %v836
  %v1076 = vpop.f32.mrb[0].mxu0
  %v1077 = vadd.f32 %v875, %v1076
  %v1078 = vpop.f32.mrb[0].mxu0
  %v1079 = vadd.f32 %v879, %v1078
  %v1080 = vpop.f32.mrb[0].mxu0
  %v1081 = vadd.f32 %v875, %v1080
  %v1082 = vpop.f32.mrb[0].mxu0
  %v1083 = vadd.f32 %v879, %v1082
  %1084 = vdwg.mxu0
  %vm1085 = vcmp.gt.f32.partialorder %v1077, 0.0
  %vm1086 = vcmp.gt.f32.partialorder %v1079, 0.0
  %vm1087 = vcmp.gt.f32.partialorder %v1081, 0.0
  %vm1088 = vcmp.gt.f32.partialorder %v1083, 0.0
  %v1089 = vmul.f32 %v1077, 0.2
  %v1090 = vmul.f32 %v1079, 0.2
  %v1091 = vmul.f32 %v1081, 0.2
  %v1092 = vmul.f32 %v1083, 0.2
  %v1093 = vsel %vm1085, %v1077, %v1089
  %v1094 = vsel %vm1086, %v1079, %v1090
  %v1095 = vsel %vm1087, %v1081, %v1091
  %v1096 = vsel %vm1088, %v1083, %v1092
  %v1097 = vpack.c.bf16 %v1095, %v1093
  %v1098 = vpack.c.bf16 %v1096, %v1094
  %v1099 = vld [vmem:[%s5] sm:$0xf]
  %v1100 = vld [vmem:[%s5 + $0x4] sm:$0xf]
  %v1101 = vld [vmem:[%s5 + $0x8] sm:$0xf]
  %v1102 = vld [vmem:[%s5 + $0xc] sm:$0xf]
  %v1103 = vld [vmem:[%s5 + $0x10] sm:$0xf]
  %v1104 = vld [vmem:[%s5 + $0x14] sm:$0xf]
  %v1105 = vld [vmem:[%s5 + $0x18] sm:$0xf]
  %v1106 = vld [vmem:[%s5 + $0x1c] sm:$0xf]
  %v1107 = vld [vmem:[%s5 + $0x20] sm:$0xf]
  %v1108 = vld [vmem:[%s5 + $0x24] sm:$0xf]
  %v1109 = vld [vmem:[%s5 + $0x28] sm:$0xf]
  %v1110 = vld [vmem:[%s5 + $0x2c] sm:$0xf]
  %v1111 = vld [vmem:[%s5 + $0x30] sm:$0xf]
  %v1112 = vld [vmem:[%s5 + $0x34] sm:$0xf]
  %v1113 = vld [vmem:[%s5 + $0x38] sm:$0xf]
  %v1114 = vld [vmem:[%s5 + $0x3c] sm:$0xf]
  %v1115 = vld [vmem:[%s5 + $0x40] sm:$0xf]
  %v1116 = vld [vmem:[%s5 + $0x44] sm:$0xf]
  %v1117 = vld [vmem:[%s5 + $0x48] sm:$0xf]
  %v1118 = vld [vmem:[%s5 + $0x4c] sm:$0xf]
  %v1119 = vld [vmem:[%s5 + $0x50] sm:$0xf]
  %v1120 = vld [vmem:[%s5 + $0x54] sm:$0xf]
  %v1121 = vld [vmem:[%s5 + $0x58] sm:$0xf]
  %v1122 = vld [vmem:[%s5 + $0x5c] sm:$0xf]
  %v1123 = vld [vmem:[%s5 + $0x60] sm:$0xf]
  %v1124 = vld [vmem:[%s5 + $0x64] sm:$0xf]
  %v1125 = vld [vmem:[%s5 + $0x68] sm:$0xf]
  %v1126 = vld [vmem:[%s5 + $0x6c] sm:$0xf]
  %v1127 = vld [vmem:[%s5 + $0x70] sm:$0xf]
  %v1128 = vld [vmem:[%s5 + $0x74] sm:$0xf]
  %v1129 = vld [vmem:[%s5 + $0x78] sm:$0xf]
  %v1130 = vld [vmem:[%s5 + $0x7c] sm:$0xf]
  %v1131 = vld [vmem:[%s6] sm:$0x1]
  %v1133 = vlaneseq
  %v1134 = vshrl.u32 %v1133, 7
  %v1135 = vsub.s32 0, %v1134
  %v1136 = vrot.slane %v1131, %v1135
  %v1170 = vunpack.c.l.b16 %v1099
  %v1171 = vunpack.c.l.b16 %v1100
  %v1172 = vunpack.c.l.b16 %v1101
  %v1173 = vunpack.c.l.b16 %v1102
  %v1174 = vunpack.c.l.b16 %v1103
  %v1175 = vunpack.c.l.b16 %v1104
  %v1176 = vunpack.c.l.b16 %v1105
  %v1177 = vunpack.c.l.b16 %v1106
  %v1178 = vunpack.c.l.b16 %v1107
  %v1179 = vunpack.c.l.b16 %v1108
  %v1180 = vunpack.c.l.b16 %v1109
  %v1181 = vunpack.c.l.b16 %v1110
  %v1182 = vunpack.c.l.b16 %v1111
  %v1183 = vunpack.c.l.b16 %v1112
  %v1184 = vunpack.c.l.b16 %v1113
  %v1185 = vunpack.c.l.b16 %v1114
  %v1186 = vunpack.c.l.b16 %v1115
  %v1187 = vunpack.c.l.b16 %v1116
  %v1188 = vunpack.c.l.b16 %v1117
  %v1189 = vunpack.c.l.b16 %v1118
  %v1190 = vunpack.c.l.b16 %v1119
  %v1191 = vunpack.c.l.b16 %v1120
  %v1192 = vunpack.c.l.b16 %v1121
  %v1193 = vunpack.c.l.b16 %v1122
  %v1194 = vunpack.c.l.b16 %v1123
  %v1195 = vunpack.c.l.b16 %v1124
  %v1196 = vunpack.c.l.b16 %v1125
  %v1197 = vunpack.c.l.b16 %v1126
  %v1198 = vunpack.c.l.b16 %v1127
  %v1199 = vunpack.c.l.b16 %v1128
  %v1200 = vunpack.c.l.b16 %v1129
  %v1201 = vunpack.c.l.b16 %v1130
  %v1202 = vpack.c.b16 %v1171, %v1170
  %v1203 = vpack.c.b16 %v1173, %v1172
  %v1204 = vpack.c.b16 %v1175, %v1174
  %v1205 = vpack.c.b16 %v1177, %v1176
  %v1206 = vpack.c.b16 %v1179, %v1178
  %v1207 = vpack.c.b16 %v1181, %v1180
  %v1208 = vpack.c.b16 %v1183, %v1182
  %v1209 = vpack.c.b16 %v1185, %v1184
  %v1210 = vpack.c.b16 %v1187, %v1186
  %v1211 = vpack.c.b16 %v1189, %v1188
  %v1212 = vpack.c.b16 %v1191, %v1190
  %v1213 = vpack.c.b16 %v1193, %v1192
  %v1214 = vpack.c.b16 %v1195, %v1194
  %v1215 = vpack.c.b16 %v1197, %v1196
  %v1216 = vpack.c.b16 %v1199, %v1198
  %v1217 = vpack.c.b16 %v1201, %v1200
  %1234 = vmatprep.subr.bf16.mxu0 0
  %1235 = vmatpush1.bf16.msra.mxu0 %v1202
  %1236 = vmatprep.subr.bf16.mxu0 0
  %1237 = vmatpush1.bf16.msra.mxu0 %v1203
  %1238 = vmatprep.subr.bf16.mxu0 0
  %1239 = vmatpush1.bf16.msra.mxu0 %v1204
  %1240 = vmatprep.subr.bf16.mxu0 0
  %1241 = vmatpush1.bf16.msra.mxu0 %v1205
  %1242 = vmatprep.subr.bf16.mxu0 0
  %1243 = vmatpush1.bf16.msra.mxu0 %v1206
  %1244 = vmatprep.subr.bf16.mxu0 0
  %1245 = vmatpush1.bf16.msra.mxu0 %v1207
  %1246 = vmatprep.subr.bf16.mxu0 0
  %1247 = vmatpush1.bf16.msra.mxu0 %v1208
  %1248 = vmatprep.subr.bf16.mxu0 0
  %1249 = vmatpush1.bf16.msra.mxu0 %v1209
  %1250 = vmatprep.subr.bf16.mxu0 0
  %1251 = vmatpush1.bf16.msra.mxu0 %v1210
  %1252 = vmatprep.subr.bf16.mxu0 0
  %1253 = vmatpush1.bf16.msra.mxu0 %v1211
  %1254 = vmatprep.subr.bf16.mxu0 0
  %1255 = vmatpush1.bf16.msra.mxu0 %v1212
  %1256 = vmatprep.subr.bf16.mxu0 0
  %1257 = vmatpush1.bf16.msra.mxu0 %v1213
  %1258 = vmatprep.subr.bf16.mxu0 0
  %1259 = vmatpush1.bf16.msra.mxu0 %v1214
  %1260 = vmatprep.subr.bf16.mxu0 0
  %1261 = vmatpush1.bf16.msra.mxu0 %v1215
  %1262 = vmatprep.subr.bf16.mxu0 0
  %1263 = vmatpush1.bf16.msra.mxu0 %v1216
  %1264 = vmatprep.subr.bf16.mxu0 0
  %1265 = vmatpush1.bf16.msra.mxu0 %v1217
  %1266 = vmatprep.mubr.bf16.mxu0 %v1098
  %1267 = vmatmul.mubr.bf16.gmra.mrb[0].mxu0 %v1097
  %v1268 = vpop.f32.mrb[0].mxu0
  %v1269 = vadd.f32 %v1136, %v1268
  %v1270 = vpop.f32.mrb[0].mxu0
  %v1271 = vpop.f32.mrb[0].mxu0
  %v1272 = vadd.f32 %v1136, %v1271
  %v1273 = vpop.f32.mrb[0].mxu0
  %1274 = vdwg.mxu0
  %v1275 = vsub.f32 0.0, %v1269
  %v1276 = vsub.f32 0.0, %v1272
  %v1277 = vmul.f32 %v1275, 1.442695
  %v1278 = vpow.pop %v1277
  %v1279 = vmul.f32 %v1276, 1.442695
  %v1280 = vpow.pop %v1279
  %v1281 = vadd.f32 %v1278, 1.0
  %v1282 = vadd.f32 %v1280, 1.0
  %v1283 = vrcp.pop %v1281
  %v1284 = vrcp.pop %v1282
  %v1285 = vpack.c.bf16 %v1284, %v1283
  %v1287 = vunpack.c.l.b16 %v1285
  %v1288 = vunpack.c.h.b16 %v1285
  %v1289 = vpack.c.b16 %v1287, %v1287
  %v1290 = vpack.c.b16 %v1288, %v1288
  %1293 = vst [vmem:[%s7] sm:$0xf] %v1289
  %1294 = vst [vmem:[%s7 + $0x4] sm:$0xf] %v1290
  // Predicated region
  $region30: #{_lambda_.1} parent=0 // pred_check
    _
  $region31: #{_lambda_.1} parent=0 // pred_check_branch
    %1296 = sbr.rel (0) target = $region33
  $region32: #{_lambda_.1} parent=0 // pred_region
    _
  $region33: #{_lambda_.1} parent=0 // pred_fallthru
    _
  // Predicated region
  $region34: #{_lambda_.1} parent=0 // pred_check
    _
  $region35: #{_lambda_.1} parent=0 // pred_check_branch
    %1298 = sbr.rel (0) target = $region37
  $region36: #{_lambda_.1} parent=0 // pred_region
    _
  $region37: #{_lambda_.1} parent=0 // pred_fallthru
    _

</llo_original>
